<compile_context>
chip_gen: v7x
topology: tpu7x:2x2x1
jax: 0.10.0
libtpu: 0.0.40
codegen_flags: <defaults>
</compile_context>

<pallas_src>
import jax
import jax.numpy as jnp
from jax.experimental import pallas as pl
from jax.experimental.pallas import tpu as pltpu


def _vmem_capacity_bytes():
    """Per-core VMEM capacity; conservative fallback = v7x's 64 MiB per TC."""
    try:
        info = pltpu.get_tpu_info()
        cap = getattr(info, "vmem_capacity_bytes", None)
        if cap:
            return int(cap)
    except Exception:
        pass
    return 64 * 1024 * 1024


def _choose_tb(B, tb_cap):
    """Largest divisor of B fitting the VMEM cap while keeping >=4 grid steps
    (>=2 per TensorCore on v7x) when B permits; prefer an even step count."""
    min_steps = 4 if B >= 4 else (2 if B >= 2 else 1)
    divisors = [d for d in range(1, B + 1) if B % d == 0]
    cands = [d for d in divisors if d <= tb_cap and B // d >= min_steps]
    if not cands:
        cands = [d for d in divisors if d <= tb_cap] or [1]
    # Prefer even grid step counts (balance across 2 TCs), then the largest tile.
    return max(cands, key=lambda d: ((B // d) % 2 == 0, d))


def _pab_kernel(bias_ref, w1_ref, w2_ref, x_ref, o_ref):
    # bias_ref: SMEM (2,)      -> [adpfactor*b1, adpfactor*b2]
    # w1_ref  : VMEM (1, D)    -> adpfactor * efc1.weight (reduce over d_model)
    # w2_ref  : VMEM (C, 1)    -> adpfactor * efc2.weight (reduce over channels)
    # x_ref   : VMEM (TB, C, D)
    # o_ref   : VMEM (TB, C, D)
    b1 = bias_ref[0]
    b2 = bias_ref[1]

    x = x_ref[...].astype(jnp.float32)            # (TB, C, D), f32 math
    w1 = w1_ref[...]                              # (1, D)
    w2 = w2_ref[...]                              # (C, 1)

    # efc1: per-(batch, channel) reduction over d_model -> (TB, C, 1)
    # TODO(synk): for very large d_model this reduction could move to the MXU
    # via jnp.dot; neutral while the kernel is HBM-bandwidth-bound.
    s1 = jax.nn.sigmoid(jnp.sum(x * w1[None, :, :], axis=2, keepdims=True) + b1)

    # efc2 on x1 = x*s1, refactored so x1 is never materialized:
    #   sum_c W2[c]*x1[b,c,d] == sum_c (W2[c]*s1[b,c]) * x[b,c,d]
    v = w2[None, :, :] * s1                       # (TB, C, 1), tiny
    s2 = jax.nn.sigmoid(jnp.sum(x * v, axis=1, keepdims=True) + b2)  # (TB, 1, D)

    o_ref[...] = (x * s1 * s2).astype(o_ref.dtype)


def process_aware_branch(x, w1, b1, w2, b2, adpfactor):
    """x: (B, C, D); w1: (D,); w2: (C,); b1, b2, adpfactor: scalars."""
    B, C, D = x.shape
    out_dtype = x.dtype

    # Fold adpfactor into weights/biases (hoisted once, host-side).
    alpha = jnp.asarray(adpfactor, jnp.float32)
    w1_in = (jnp.asarray(w1, jnp.float32) * alpha).reshape(1, D)
    w2_in = (jnp.asarray(w2, jnp.float32) * alpha).reshape(C, 1)
    bias = jnp.stack([jnp.asarray(b1, jnp.float32) * alpha,
                      jnp.asarray(b2, jnp.float32) * alpha])

    # Generation-aware VMEM budgets.
    vmem_cap = _vmem_capacity_bytes()
    vmem_limit = vmem_cap // 2          # 32 MiB on v7x, 64 MiB on v5e/v6e
    tile_budget = vmem_cap // 4         # 16 MiB on v7x, 32 MiB on v5e/v6e

    # Guard: a single batch row (plus f32 intermediates) must fit in VMEM.
    # TODO(synk): D-chunked two-pass fallback (s1 pass, then s2 pass) for huge C*D.
    if 5 * C * D * 4 > vmem_limit:
        raise NotImplementedError(
            "channels*d_model too large for a single-row VMEM tile")

    # Dtype-aware per-batch-row footprint: double-buffered in + out tiles plus
    # ~3 f32-sized intermediates live in-kernel.
    itemsize = jnp.dtype(x.dtype).itemsize
    per_row_bytes = C * D * (2 * itemsize + 2 * itemsize + 3 * 4)
    tb_cap = max(1, min(B, tile_budget // per_row_bytes))
    tb = _choose_tb(B, tb_cap)
    grid_b = B // tb

    grid_spec = pltpu.PrefetchScalarGridSpec(
        num_scalar_prefetch=0,
        grid=(grid_b,),
        in_specs=[
            pl.BlockSpec(memory_space=pltpu.MemorySpace.SMEM),  # folded biases
            pl.BlockSpec((1, D), lambda i: (0, 0)),             # w1 (resident)
            pl.BlockSpec((C, 1), lambda i: (0, 0)),             # w2 (resident)
            # Full C/D extents per block: no padding, no output slice needed.
            pl.BlockSpec((tb, C, D), lambda i: (i, 0, 0)),       # x tile
        ],
        out_specs=pl.BlockSpec((tb, C, D), lambda i: (i, 0, 0)),
    )

    return pl.pallas_call(
        _pab_kernel,
        out_shape=jax.ShapeDtypeStruct((B, C, D), out_dtype),
        grid_spec=grid_spec,
        compiler_params=pltpu.CompilerParams(
            dimension_semantics=("parallel",),
            vmem_limit_bytes=int(vmem_limit)),
    )(bias, w1_in, w2_in, x)


def process_aware_branch_ref(x, w1, b1, w2, b2, adpfactor):
    """Pure-JAX reference mirroring the PyTorch forward."""
    s1 = jax.nn.sigmoid(adpfactor * (jnp.einsum("bcd,d->bc", x, w1) + b1))   # (B, C)
    x1 = x * s1[:, :, None]
    s2 = jax.nn.sigmoid(adpfactor * (jnp.einsum("bcd,c->bd", x1, w2) + b2))  # (B, D)
    return x1 * s2[:, None, :]


if __name__ == "__main__":
    key = jax.random.PRNGKey(0)

    all_ok = True
    # Aligned shape, unaligned tiny shape, and an odd-batch unaligned shape.
    for (B, channels, d_model) in [(8, 8, 128), (2, 4, 32), (5, 6, 40)]:
        kx, k1, k2, kb1, kb2, key = jax.random.split(key, 6)

        x = jax.random.normal(kx, (B, channels, d_model), dtype=jnp.float32)
        # Deterministic synthetic parameters (shapes match the nn.Module __init__).
        w1 = jax.random.normal(k1, (d_model,), dtype=jnp.float32) * 0.1   # efc1.weight (1, d_model, 1)
        b1 = jax.random.normal(kb1, (), dtype=jnp.float32) * 0.1          # efc1.bias   (1,)
        w2 = jax.random.normal(k2, (channels,), dtype=jnp.float32) * 0.1  # efc2.weight (1, channels, 1)
        b2 = jax.random.normal(kb2, (), dtype=jnp.float32) * 0.1          # efc2.bias   (1,)
        adpfactor = jnp.float32(1.3)                                      # nn.Parameter value

        out = jax.block_until_ready(
            process_aware_branch(x, w1, b1, w2, b2, adpfactor))
        ref = process_aware_branch_ref(x, w1, b1, w2, b2, adpfactor)

        assert out.shape == (B, channels, d_model)
        all_ok = all_ok and bool(jnp.allclose(out, ref, atol=1e-5, rtol=1e-5))

    assert all_ok, "mismatch vs reference"
    print("KERNEL_OK")
</pallas_src>

<mosaic_0001>
module attributes {stable_mosaic.version = 11 : i64} {
  func.func @_pab_kernel(%arg0: i32, %arg1: memref<2xf32, #tpu.memory_space<smem>>, %arg2: memref<1x128xf32, #tpu.memory_space<vmem>>, %arg3: memref<8x1xf32, #tpu.memory_space<vmem>>, %arg4: memref<2x8x128xf32, #tpu.memory_space<vmem>>, %arg5: memref<2x8x128xf32, #tpu.memory_space<vmem>>) attributes {dimension_semantics = [#tpu.dimension_semantics<parallel>], iteration_bounds = array<i64: 4>, scalar_prefetch = 0 : i64, scratch_operands = 0 : i64, tpu.core_type = #tpu.core_type<tc>, window_params = [{transform_indices = @transform_0, window_bounds = array<i64: 2>}, {pipeline_mode = #tpu.pipeline_mode<synchronous>, transform_indices = @transform_1, window_bounds = array<i64: 1, 128>}, {pipeline_mode = #tpu.pipeline_mode<synchronous>, transform_indices = @transform_2, window_bounds = array<i64: 8, 1>}, {transform_indices = @transform_3, window_bounds = array<i64: 2, 8, 128>}, {transform_indices = @transform_4, window_bounds = array<i64: 2, 8, 128>}]} {
    %c0 = arith.constant 0 : index
    %0 = memref.load %arg1[%c0] : memref<2xf32, #tpu.memory_space<smem>>
    %c1 = arith.constant 1 : index
    %1 = memref.load %arg1[%c1] : memref<2xf32, #tpu.memory_space<smem>>
    %c0_0 = arith.constant 0 : index
    %c0_1 = arith.constant 0 : index
    %c0_2 = arith.constant 0 : index
    %2 = vector.load %arg4[%c0_0, %c0_1, %c0_2] : memref<2x8x128xf32, #tpu.memory_space<vmem>>, vector<2x8x128xf32>
    %c0_3 = arith.constant 0 : index
    %c0_4 = arith.constant 0 : index
    %3 = vector.load %arg2[%c0_3, %c0_4] : memref<1x128xf32, #tpu.memory_space<vmem>>, vector<1x128xf32>
    %c0_5 = arith.constant 0 : index
    %c0_6 = arith.constant 0 : index
    %4 = vector.load %arg3[%c0_5, %c0_6] : memref<8x1xf32, #tpu.memory_space<vmem>>, vector<8x1xf32>
    %5 = vector.shape_cast %3 : vector<1x128xf32> to vector<1x1x128xf32>
    %6 = vector.broadcast %5 : vector<1x1x128xf32> to vector<2x8x128xf32>
    %7 = arith.mulf %2, %6 : vector<2x8x128xf32>
    %cst = arith.constant dense<0.000000e+00> : vector<2x8xf32>
    %8 = vector.multi_reduction <add>, %7, %cst [2] : vector<2x8x128xf32> to vector<2x8xf32>
    %9 = vector.shape_cast %8 : vector<2x8xf32> to vector<2x8x1xf32>
    %10 = vector.broadcast %0 : f32 to vector<2x8x1xf32>
    %11 = arith.addf %9, %10 : vector<2x8x1xf32>
    %12 = arith.negf %11 : vector<2x8x1xf32>
    %13 = math.exp %12 : vector<2x8x1xf32>
    %cst_7 = arith.constant 1.000000e+00 : f32
    %14 = vector.broadcast %cst_7 : f32 to vector<2x8x1xf32>
    %15 = arith.addf %14, %13 : vector<2x8x1xf32>
    %16 = arith.divf %14, %15 : vector<2x8x1xf32>
    %17 = vector.shape_cast %4 : vector<8x1xf32> to vector<1x8x1xf32>
    %18 = vector.broadcast %17 : vector<1x8x1xf32> to vector<2x8x1xf32>
    %19 = arith.mulf %18, %16 : vector<2x8x1xf32>
    %20 = vector.broadcast %19 : vector<2x8x1xf32> to vector<2x8x128xf32>
    %21 = arith.mulf %2, %20 : vector<2x8x128xf32>
    %cst_8 = arith.constant dense<0.000000e+00> : vector<2x128xf32>
    %22 = vector.multi_reduction <add>, %21, %cst_8 [1] : vector<2x8x128xf32> to vector<2x128xf32>
    %23 = vector.shape_cast %22 : vector<2x128xf32> to vector<2x1x128xf32>
    %24 = vector.broadcast %1 : f32 to vector<2x1x128xf32>
    %25 = arith.addf %23, %24 : vector<2x1x128xf32>
    %26 = arith.negf %25 : vector<2x1x128xf32>
    %27 = math.exp %26 : vector<2x1x128xf32>
    %cst_9 = arith.constant 1.000000e+00 : f32
    %28 = vector.broadcast %cst_9 : f32 to vector<2x1x128xf32>
    %29 = arith.addf %28, %27 : vector<2x1x128xf32>
    %30 = arith.divf %28, %29 : vector<2x1x128xf32>
    %31 = vector.broadcast %16 : vector<2x8x1xf32> to vector<2x8x128xf32>
    %32 = arith.mulf %2, %31 : vector<2x8x128xf32>
    %33 = vector.broadcast %30 : vector<2x1x128xf32> to vector<2x8x128xf32>
    %34 = arith.mulf %32, %33 : vector<2x8x128xf32>
    %c0_10 = arith.constant 0 : index
    %c0_11 = arith.constant 0 : index
    %c0_12 = arith.constant 0 : index
    %35 = vector.load %arg5[%c0_10, %c0_11, %c0_12] : memref<2x8x128xf32, #tpu.memory_space<vmem>>, vector<2x8x128xf32>
    tpu.vector_store %arg5[%c0_10, %c0_11, %c0_12], %34 {strides = array<i32>} : memref<2x8x128xf32, #tpu.memory_space<vmem>>, vector<2x8x128xf32>,
    return
  }
  func.func @transform_0(%arg0: i32) -> i32 {
    %c0_i32 = arith.constant 0 : i32
    %c0_i32_0 = arith.constant 0 : i32
    return %c0_i32 : i32
  }
  func.func @transform_1(%arg0: i32) -> (i32, i32) {
    %c0_i32 = arith.constant 0 : i32
    %c0_i32_0 = arith.constant 0 : i32
    %c0_i32_1 = arith.constant 0 : i32
    return %c0_i32, %c0_i32_0 : i32, i32
  }
  func.func @transform_2(%arg0: i32) -> (i32, i32) {
    %c0_i32 = arith.constant 0 : i32
    %c0_i32_0 = arith.constant 0 : i32
    %c0_i32_1 = arith.constant 0 : i32
    return %c0_i32, %c0_i32_0 : i32, i32
  }
  func.func @transform_3(%arg0: i32) -> (i32, i32, i32) {
    %c0_i32 = arith.constant 0 : i32
    %c0_i32_0 = arith.constant 0 : i32
    %c0_i32_1 = arith.constant 0 : i32
    return %arg0, %c0_i32, %c0_i32_0 : i32, i32, i32
  }
  func.func @transform_4(%arg0: i32) -> (i32, i32, i32) {
    %c0_i32 = arith.constant 0 : i32
    %c0_i32_0 = arith.constant 0 : i32
    %c0_i32_1 = arith.constant 0 : i32
    return %arg0, %c0_i32, %c0_i32_0 : i32, i32, i32
  }
}

</mosaic_0001>

<llo_original>
// kernel: tpu_custom_call.1
$region0: #{tpu_custom_call.1}
  #allocation0 [shape = 'u32[]', space=smem, size = 0x4, offset = 0x4, fixed_abs, tag = 'smem constant byte address 0x4 - core index']
  #allocation1 [shape = 'u32[144,128]{1,0:T(1,128)}', space=vmem, size = 0x12000, scoped, tag = 'internal scratch']
  %s0 = inlined_call_operand.vmem [shape: f32[2], index: 0, kind: input, shape index: {}]
  %s1 = inlined_call_operand.vmem [shape: f32[1,128], index: 1, kind: input, shape index: {}]
  %s2 = inlined_call_operand.vmem [shape: f32[8,1], index: 2, kind: input, shape index: {}]
  %s3 = inlined_call_operand.hbm [shape: f32[8,8,128], index: 3, kind: input, shape index: {}]
  %s4 = inlined_call_operand.hbm [shape: f32[8,8,128], index: 4, kind: output, shape index: {}]
  %s5 = sld [smem:[#allocation0]]
  $region57: #{tpu_custom_call.1} parent=0
    _
  %s7 = ssub.s32 1, %s5
  %s8 = scalar_select 0, %s7, %s5
  $region1: #{tpu_custom_call.1} parent=0
    #allocation2 [shape = 'u8[512]{0}', space=smem, size = 0x200, scoped, tag = 'input window, operand 0, single buffered']
    #allocation3 [shape = 's32[2]{0}', space=sflag, size = 0x8, scoped, tag = 'scoped memory for tpu_custom_call.1']
    #allocation4 [shape = 's32[2]{0}', space=sflag, size = 0x8, scoped, tag = 'scoped memory for tpu_custom_call.1']
    #allocation5 [shape = 's32[2]{0}', space=sflag, size = 0x8, scoped, tag = 'scoped memory for tpu_custom_call.1']
    #allocation6 [shape = 'u8[16384]{0}', space=vmem, size = 0x4000, scoped, tag = 'input window, operand 3']
    #allocation7 [shape = 'u8[16384]{0}', space=vmem, size = 0x4000, scoped, tag = 'output window, operand 0']
    %9 = vsyncpa [#allocation5], 0
    %10 = vsyncpa [#allocation3], 0
    %s11 = scalar_lea.sflag [#allocation3], 1
    %12 = vsyncpa %s11, 0
    %13 = vsyncpa [#allocation4], 0
    %s14 = scalar_lea.sflag [#allocation4], 1
    %15 = vsyncpa %s14, 0
    loop: start=0, step=1, limit=6
    $region2: #{tpu_custom_call.1} parent=1 // loop_pre_header
      _
    $region3: #{tpu_custom_call.1} parent=1 // loop_header
      %s17 = sphi 0, %s21
      %p18 = scmp.ge.s32.totalorder %s17, 6
      %s25 = sphi 0, %s25
      %s27 = sphi 0, %s25
      %s28 = sphi 0, %s27
      %s42 = sphi 0, %s28
      %s46 = sphi 0, %s46
      %s48 = sphi 0, %s46
      %s49 = sphi 0, %s48
      %s63 = sphi 0, %s49
      %s67 = sphi 0, %s67
      %s69 = sphi 0, %s67
      %s70 = sphi 0, %s69
      %s84 = sphi 0, %s70
      %s90 = sphi 0, %s92
      %s93 = sphi 0, %s90
      %s94 = sphi 0, %s93
      %s110 = sphi 0, %s94
      %s116 = sphi 0, %s118
      %s119 = sphi 0, %s116
      %s120 = sphi 0, %s119
      %s136 = sphi 0, %s120
    $region4: #{tpu_custom_call.1} parent=1 // loop_header_branch
      %20 = sbr.rel (%p18) target = $region8
    $region5: #{tpu_custom_call.1} parent=1 // loop_body
      %s22 = ssub.s32 %s17, 1
      %s23 = ssub.s32 %s17, 2
      %s24 = sadd.s32 %s17, 1
      %s26 = sadd.s32 %s25, 1
      %p29 = scmp.eq.s32.totalorder %s17, 3
      %p30 = scmp.ne.s32.totalorder %s25, %s27
      %p31 = scmp.eq.s32.totalorder %s17, 0
      %p32 = por %p30, %p31
      %p33 = scmp.ne.s32.totalorder %s25, %s27
      %p34 = scmp.eq.s32.totalorder %s22, 3
      %p35 = por %p33, %p34
      %p36 = scmp.ne.s32.totalorder %s27, %s28
      %p37 = scmp.eq.s32.totalorder %s22, 0
      %p38 = por %p36, %p37
      %p39 = scmp.ne.s32.totalorder %s27, %s28
      %p40 = scmp.eq.s32.totalorder %s23, 3
      %p41 = por %p39, %p40
      %p43 = scmp.ne.s32.totalorder %s28, %s42
      %p44 = scmp.eq.s32.totalorder %s23, 0
      %p45 = por %p43, %p44
      %s47 = sadd.s32 %s46, 1
      %p50 = scmp.eq.s32.totalorder %s17, 3
      %p51 = scmp.ne.s32.totalorder %s46, %s48
      %p52 = scmp.eq.s32.totalorder %s17, 0
      %p53 = por %p51, %p52
      %p54 = scmp.ne.s32.totalorder %s46, %s48
      %p55 = scmp.eq.s32.totalorder %s22, 3
      %p56 = por %p54, %p55
      %p57 = scmp.ne.s32.totalorder %s48, %s49
      %p58 = scmp.eq.s32.totalorder %s22, 0
      %p59 = por %p57, %p58
      %p60 = scmp.ne.s32.totalorder %s48, %s49
      %p61 = scmp.eq.s32.totalorder %s23, 3
      %p62 = por %p60, %p61
      %p64 = scmp.ne.s32.totalorder %s49, %s63
      %p65 = scmp.eq.s32.totalorder %s23, 0
      %p66 = por %p64, %p65
      %s68 = sadd.s32 %s67, 1
      %p71 = scmp.eq.s32.totalorder %s17, 3
      %p72 = scmp.ne.s32.totalorder %s67, %s69
      %p73 = scmp.eq.s32.totalorder %s17, 0
      %p74 = por %p72, %p73
      %p75 = scmp.ne.s32.totalorder %s67, %s69
      %p76 = scmp.eq.s32.totalorder %s22, 3
      %p77 = por %p75, %p76
      %p78 = scmp.ne.s32.totalorder %s69, %s70
      %p79 = scmp.eq.s32.totalorder %s22, 0
      %p80 = por %p78, %p79
      %p81 = scmp.ne.s32.totalorder %s69, %s70
      %p82 = scmp.eq.s32.totalorder %s23, 3
      %p83 = por %p81, %p82
      %p85 = scmp.ne.s32.totalorder %s70, %s84
      %p86 = scmp.eq.s32.totalorder %s23, 0
      %p87 = por %p85, %p86
      %s88 = ssub.s32 %s17, %s24
      %p89 = scmp.eq.s32.totalorder %s88, 0
      %s91 = sadd.s32 %s90, 1
      %s92 = scalar_select %p89, %s90, %s91
      %p95 = pneg %p89
      %p96 = scmp.eq.s32.totalorder %s17, 3
      %p97 = por %p95, %p96
      %p98 = scmp.ne.s32.totalorder %s90, %s93
      %p99 = scmp.eq.s32.totalorder %s17, 0
      %p100 = por %p98, %p99
      %p101 = scmp.ne.s32.totalorder %s90, %s93
      %p102 = scmp.eq.s32.totalorder %s22, 3
      %p103 = por %p101, %p102
      %p104 = scmp.ne.s32.totalorder %s93, %s94
      %p105 = scmp.eq.s32.totalorder %s22, 0
      %p106 = por %p104, %p105
      %p107 = scmp.ne.s32.totalorder %s93, %s94
      %p108 = scmp.eq.s32.totalorder %s23, 3
      %p109 = por %p107, %p108
      %p111 = scmp.ne.s32.totalorder %s94, %s110
      %p112 = scmp.eq.s32.totalorder %s23, 0
      %p113 = por %p111, %p112
      %s114 = ssub.s32 %s17, %s24
      %p115 = scmp.eq.s32.totalorder %s114, 0
      %s117 = sadd.s32 %s116, 1
      %s118 = scalar_select %p115, %s116, %s117
      %p121 = pneg %p115
      %p122 = scmp.eq.s32.totalorder %s17, 3
      %p123 = por %p121, %p122
      %p124 = scmp.ne.s32.totalorder %s116, %s119
      %p125 = scmp.eq.s32.totalorder %s17, 0
      %p126 = por %p124, %p125
      %p127 = scmp.ne.s32.totalorder %s116, %s119
      %p128 = scmp.eq.s32.totalorder %s22, 3
      %p129 = por %p127, %p128
      %p130 = scmp.ne.s32.totalorder %s119, %s120
      %p131 = scmp.eq.s32.totalorder %s22, 0
      %p132 = por %p130, %p131
      %p133 = scmp.ne.s32.totalorder %s119, %s120
      %p134 = scmp.eq.s32.totalorder %s23, 3
      %p135 = por %p133, %p134
      %p137 = scmp.ne.s32.totalorder %s120, %s136
      %p138 = scmp.eq.s32.totalorder %s23, 0
      %p139 = por %p137, %p138
      %p140 = scmp.le.s32.totalorder 1, %s17
      %p141 = scmp.lt.s32.totalorder %s17, 5
      %p142 = pnand %p140, %p141
      %p143 = pneg %p142
      // Predicated region
      $region9: #{tpu_custom_call.1} parent=5 // pred_check
        _
      $region10: #{tpu_custom_call.1} parent=5 // pred_check_branch
        %145 = sbr.rel (%p142) target = $region12
      $region11: #{tpu_custom_call.1} parent=5 // pred_region
        %s146 = ssub.s32 %s17, 1
        // Predicated region
        $region13: #{tpu_custom_call.1} parent=11 // pred_check
          %p147 = pneg %p38
        $region14: #{tpu_custom_call.1} parent=11 // pred_check_branch
          %149 = sbr.rel (%p147) target = $region16
        $region15: #{tpu_custom_call.1} parent=11 // pred_region
          %s151 = ssub.s32 16, 16
          %152 = vsyncadd [#allocation5], %s151
          %s154 = sshll.u32 %s0, 4
          %s155 = int_to_ptr.vmem [resolvable:$true] %s154
          %157 = dma.vmem_to_smem %s155, 16, [#allocation2], [#allocation5]
        $region16: #{tpu_custom_call.1} parent=11 // pred_fallthru
          _
        // Predicated region
        $region17: #{tpu_custom_call.1} parent=11 // pred_check
          %p158 = pneg %p59
        $region18: #{tpu_custom_call.1} parent=11 // pred_check_branch
          %160 = sbr.rel (%p158) target = $region20
        $region19: #{tpu_custom_call.1} parent=11 // pred_region
          _
        $region20: #{tpu_custom_call.1} parent=11 // pred_fallthru
          _
        // Predicated region
        $region21: #{tpu_custom_call.1} parent=11 // pred_check
          %p161 = pneg %p80
        $region22: #{tpu_custom_call.1} parent=11 // pred_check_branch
          %163 = sbr.rel (%p161) target = $region24
        $region23: #{tpu_custom_call.1} parent=11 // pred_region
          _
        $region24: #{tpu_custom_call.1} parent=11 // pred_fallthru
          _
      $region12: #{tpu_custom_call.1} parent=5 // pred_fallthru
        _
      %p164 = scmp.lt.s32.totalorder %s17, 4
      // Predicated region
      $region25: #{tpu_custom_call.1} parent=5 // pred_check
        %p165 = pneg %p164
      $region26: #{tpu_custom_call.1} parent=5 // pred_check_branch
        %167 = sbr.rel (%p165) target = $region28
      $region27: #{tpu_custom_call.1} parent=5 // pred_region
        // Predicated region
        $region29: #{tpu_custom_call.1} parent=27 // pred_check
          %p168 = pneg %p100
        $region30: #{tpu_custom_call.1} parent=27 // pred_check_branch
          %170 = sbr.rel (%p168) target = $region32
        $region31: #{tpu_custom_call.1} parent=27 // pred_region
          %s171 = sand.u32 %s90, 1
          %s172 = scalar_lea.sflag [#allocation3], %s171
          %s173 = sand.u32 %s90, 1
          %s174 = smul.addr %s173, 16
          %s175 = scalar_lea.vmem [#allocation6], %s174
          %s176 = smul.u32 2, %s17
          %s178 = ssub.s32 256, 256
          %179 = vsyncadd %s172, %s178
          %s180 = smul.addr %s176, 128
          %s181 = scalar_lea.hbm %s3, %s180
          %s182 = sshll.u32 %s175, 4
          %s183 = int_to_ptr.vmem [resolvable:$true] %s182
          %188 = dma.hbm_to_vmem [thread:$0]  %s181, 256, %s183, %s172, 128, 128, 8
        $region32: #{tpu_custom_call.1} parent=27 // pred_fallthru
          _
      $region28: #{tpu_custom_call.1} parent=5 // pred_fallthru
        _
      %p189 = scmp.le.s32.totalorder 1, %s17
      %p190 = scmp.lt.s32.totalorder %s17, 5
      %p191 = pnand %p189, %p190
      %p192 = pneg %p191
      // Predicated region
      $region33: #{tpu_custom_call.1} parent=5 // pred_check
        _
      $region34: #{tpu_custom_call.1} parent=5 // pred_check_branch
        %194 = sbr.rel (%p191) target = $region36
      $region35: #{tpu_custom_call.1} parent=5 // pred_region
        %s195 = ssub.s32 %s17, 1
        // Predicated region
        $region37: #{tpu_custom_call.1} parent=35 // pred_check
          %p196 = pneg %p38
        $region38: #{tpu_custom_call.1} parent=35 // pred_check_branch
          %198 = sbr.rel (%p196) target = $region40
        $region39: #{tpu_custom_call.1} parent=35 // pred_region
          %199 = dma.done [#allocation5], 16
        $region40: #{tpu_custom_call.1} parent=35 // pred_fallthru
          _
        %s200 = sand.u32 %s93, 1
        %s201 = scalar_lea.sflag [#allocation3], %s200
        %s202 = sand.u32 %s93, 1
        %s203 = smul.addr %s202, 16
        %s204 = scalar_lea.vmem [#allocation6], %s203
        // Predicated region
        $region41: #{tpu_custom_call.1} parent=35 // pred_check
          %p205 = pneg %p106
        $region42: #{tpu_custom_call.1} parent=35 // pred_check_branch
          %207 = sbr.rel (%p205) target = $region44
        $region43: #{tpu_custom_call.1} parent=35 // pred_region
          %208 = dma.done %s201, 256
        $region44: #{tpu_custom_call.1} parent=35 // pred_fallthru
          _
        %209 = sfence
        %p210 = pneg %p38
        %p211 = pneg %p35
        %p212 = pneg %p59
        %p213 = pneg %p56
        %p214 = pneg %p80
        %p215 = pneg %p77
        %s216 = sand.u32 %s93, 1
        %s217 = scalar_lea.sflag [#allocation3], %s216
        %s218 = sand.u32 %s93, 1
        %s219 = smul.addr %s218, 16
        %s220 = scalar_lea.vmem [#allocation6], %s219
        %p221 = pneg %p106
        %p222 = pneg %p103
        %p223 = pneg %p132
        %p224 = pneg %p129
        %s225 = sand.u32 %s119, 1
        %s226 = scalar_lea.sflag [#allocation4], %s225
        %s227 = sand.u32 %s119, 1
        %s228 = smul.addr %s227, 16
        %s229 = scalar_lea.vmem [#allocation7], %s228
        %s230 = smul.u32 2, %s22
        %s231 = smul.u32 2, %s22
        %s232 = sld [smem:[#allocation2]]
        %s233 = sld [smem:[#allocation2 + $0x1]]
        %v234 = vld [vmem:[%s204] sm:$0xff]
        %v235 = vld [vmem:[%s204 + $0x8] sm:$0xff]
        %v236 = vld [vmem:[%s1] sm:$0x1]
        %v237 = vld [vmem:[%s2] sm:$0xff]
        %v239 = vlaneseq
        %v240 = vshrl.u32 %v239, 7
        %v241 = vsub.s32 0, %v240
        %v242 = vrot.slane %v236, %v241
        %v244 = vmul.f32 %v234, %v242
        %v245 = vmul.f32 %v235, %v242
        %246 = vadd.xlane.f32.xlu0 %v244
        %v247 = vpop.xlane.xlu0 %246
        %248 = vadd.xlane.f32.xlu0 %v245
        %v249 = vpop.xlane.xlu0 %248
        %v250 = vstv %s232
        %v251 = vadd.f32 %v247, %v250
        %v252 = vadd.f32 %v249, %v250
        %v253 = vxor.u32 %v251, 2147483648
        %v254 = vxor.u32 %v252, 2147483648
        %v255 = vmul.f32 %v253, 1.442695
        %v256 = vpow.pop %v255
        %v257 = vmul.f32 %v254, 1.442695
        %v258 = vpow.pop %v257
        %v259 = vadd.f32 %v256, 1.0
        %v260 = vadd.f32 %v258, 1.0
        %v261 = vrcp.pop %v259
        %v262 = vmul.f32 1.0, %v261
        %v263 = vrcp.pop %v260
        %v264 = vmul.f32 1.0, %v263
        %v265 = vmul.f32 %v237, %v262
        %v266 = vmul.f32 %v237, %v264
        %268 = vset.pattern.permute.xlu0 0
        %269 = vperm.xlu0 %268, %v265
        %v270 = vpop.permute.xlu0 %269
        %273 = vset.pattern.permute.xlu0 0
        %274 = vperm.xlu0 %273, %v266
        %v275 = vpop.permute.xlu0 %274
        %v277 = vmul.f32 %v234, %v270
        %v278 = vmul.f32 %v235, %v275
        %v279 = vrot.slane %v277, 4
        %v280 = vadd.f32 %v277, %v279
        %v281 = vrot.slane %v280, 2
        %v282 = vadd.f32 %v280, %v281
        %v283 = vrot.slane %v282, 1
        %v284 = vadd.f32 %v282, %v283
        %v285 = vrot.slane %v278, 4
        %v286 = vadd.f32 %v278, %v285
        %v287 = vrot.slane %v286, 2
        %v288 = vadd.f32 %v286, %v287
        %v289 = vrot.slane %v288, 1
        %v290 = vadd.f32 %v288, %v289
        %v291 = vstv %s233
        %v292 = vadd.f32 %v284, %v291
        %v293 = vadd.f32 %v290, %v291
        %v294 = vxor.u32 %v292, 2147483648
        %v295 = vxor.u32 %v293, 2147483648
        %v296 = vmul.f32 %v294, 1.442695
        %v297 = vpow.pop %v296
        %v298 = vmul.f32 %v295, 1.442695
        %v299 = vpow.pop %v298
        %v300 = vadd.f32 %v297, 1.0
        %v301 = vadd.f32 %v299, 1.0
        %v302 = vrcp.pop %v300
        %v303 = vmul.f32 1.0, %v302
        %v304 = vrcp.pop %v301
        %v305 = vmul.f32 1.0, %v304
        %v306 = vmul.f32 %v234, %v262
        %v307 = vmul.f32 %v235, %v264
        %v308 = vmul.f32 %v306, %v303
        %v309 = vmul.f32 %v307, %v305
        %310 = vst [vmem:[%s229] sm:$0xff] %v308
        %311 = vst [vmem:[%s229 + $0x8] sm:$0xff] %v309
        %s312 = sand.u32 %s119, 1
        %s313 = scalar_lea.sflag [#allocation4], %s312
        %s314 = sand.u32 %s119, 1
        %s315 = smul.addr %s314, 16
        %s316 = scalar_lea.vmem [#allocation7], %s315
        // Predicated region
        $region45: #{tpu_custom_call.1} parent=35 // pred_check
          %p317 = pneg %p129
        $region46: #{tpu_custom_call.1} parent=35 // pred_check_branch
          %319 = sbr.rel (%p317) target = $region48
        $region47: #{tpu_custom_call.1} parent=35 // pred_region
          %s320 = smul.u32 2, %s22
          %s322 = ssub.s32 256, 256
          %323 = vsyncadd %s313, %s322
          %s324 = smul.addr %s320, 128
          %s325 = scalar_lea.hbm %s4, %s324
          %s326 = sshll.u32 %s316, 4
          %s327 = int_to_ptr.vmem [resolvable:$true] %s326
          %332 = dma.vmem_to_hbm [thread:$0]  %s327, 256, %s325, %s313, 128, 128, 8
        $region48: #{tpu_custom_call.1} parent=35 // pred_fallthru
          _
      $region36: #{tpu_custom_call.1} parent=5 // pred_fallthru
        _
      %p333 = scmp.le.s32.totalorder 2, %s17
      // Predicated region
      $region49: #{tpu_custom_call.1} parent=5 // pred_check
        %p334 = pneg %p333
      $region50: #{tpu_custom_call.1} parent=5 // pred_check_branch
        %336 = sbr.rel (%p334) target = $region52
      $region51: #{tpu_custom_call.1} parent=5 // pred_region
        %s337 = ssub.s32 %s17, 2
        // Predicated region
        $region53: #{tpu_custom_call.1} parent=51 // pred_check
          %p338 = pneg %p135
        $region54: #{tpu_custom_call.1} parent=51 // pred_check_branch
          %340 = sbr.rel (%p338) target = $region56
        $region55: #{tpu_custom_call.1} parent=51 // pred_region
          %s341 = sand.u32 %s120, 1
          %s342 = scalar_lea.sflag [#allocation4], %s341
          %s343 = sand.u32 %s120, 1
          %s344 = smul.addr %s343, 16
          %s345 = scalar_lea.vmem [#allocation7], %s344
          %346 = dma.done %s342, 256
        $region56: #{tpu_custom_call.1} parent=51 // pred_fallthru
          _
      $region52: #{tpu_custom_call.1} parent=5 // pred_fallthru
        _
    $region6: #{tpu_custom_call.1} parent=1 // loop_footer
      %s21 = sadd.s32 1, %s17
    $region7: #{tpu_custom_call.1} parent=1 // loop_footer_branch
      %16 = sbr.rel target = $region3
    $region8: #{tpu_custom_call.1} parent=1 // loop_exit
      _
    %347 = vsyncpa [#allocation3], 1
    %s348 = scalar_lea.sflag [#allocation3], 1
    %349 = vsyncpa %s348, 1
    %350 = vsyncpa [#allocation4], 1
    %s351 = scalar_lea.sflag [#allocation4], 1
    %352 = vsyncpa %s351, 1
    %353 = vsyncpa [#allocation5], 1
    %s354 = scalar_lea.sflag [#allocation5], 1
    %355 = vsyncpa %s354, 1

</llo_original>
